<compile_context>
chip_gen: v7x
topology: tpu7x:2x2x1
jax: 0.10.0
libtpu: 0.0.40
codegen_flags: <defaults>
</compile_context>

<pallas_src>
import functools

import jax
import jax.numpy as jnp
from jax.experimental import pallas as pl
from jax.experimental.pallas import tpu as pltpu

_EPS = 1e-6  # torch.pairwise_distance default eps (added to the difference)


def _dist_loss_kernel(x_ref, o_ref, *, total_rows):
    """x_ref: (m, TB, D) VMEM block; o_ref: (1, 1) f32 SMEM resident accumulator."""
    c = pl.program_id(0)                  # core-split axis ("parallel")
    b = pl.program_id(1)                  # batch-tile axis ("arbitrary")
    tiles_per_core = pl.num_programs(1)
    m, tb, d = x_ref.shape

    @pl.when(b == 0)
    def _init():
        o_ref[0, 0] = jnp.float32(0.0)

    # MXU reduce vector: row-sum of squared differences = (diff*diff) @ ones.
    ones = jnp.ones((d, 1), jnp.float32)

    # Branch tiles stay in the input dtype; upcast per pair (cheap VPU work
    # that hides under the DMA) instead of materializing m f32 copies.
    xs = [x_ref[i] for i in range(m)]

    tile_sum = jnp.zeros((tb, 1), jnp.float32)
    for i in range(m):
        xi = xs[i].astype(jnp.float32)
        for j in range(i + 1, m):
            diff = xi - xs[j].astype(jnp.float32) + _EPS        # (TB, D)  VPU
            sq = jnp.dot(diff * diff, ones,                     # (TB, 1)  MXU
                         preferred_element_type=jnp.float32)
            tile_sum = tile_sum + jnp.sqrt(sq)                  # (TB, 1)  EUP

    # Logical tile index (core-major) and boundary detection.  The mask only
    # runs on the tile that overhangs the true batch size (or on a duplicated,
    # clamped tile from an odd per-core split); interior tiles skip it.
    t = c * tiles_per_core + b
    tile_start = t * tb
    is_full = (tile_start + tb) <= total_rows

    @pl.when(is_full)
    def _accum_full():
        o_ref[0, 0] += jnp.sum(tile_sum)

    @pl.when(jnp.logical_not(is_full))
    def _accum_boundary():
        row = jax.lax.broadcasted_iota(jnp.int32, (tb, 1), 0)
        valid = (tile_start + row) < total_rows
        o_ref[0, 0] += jnp.sum(jnp.where(valid, tile_sum, 0.0))


def _tpu_params():
    """(vmem_capacity_bytes, num_tensorcores) with conservative fallbacks."""
    vmem_cap = 64 << 20            # conservative (v7x-sized) fallback
    num_tc = 1                     # single-TC fallback (v5e / v6e)
    try:
        info = pltpu.get_tpu_info()
        try:
            vmem_cap = int(info.vmem_capacity_bytes)
        except Exception:
            pass
        for attr in ("num_cores", "core_count", "tensorcore_count",
                     "num_tensorcores"):
            try:
                v = int(getattr(info, attr))
            except Exception:
                continue
            if v >= 1:
                num_tc = v
                break
    except Exception:
        pass
    return vmem_cap, num_tc


def _choose_tb(m, B, D, itemsize, vmem_cap):
    """Rows per batch tile, sized by BYTES (not rows): the double-buffered
    (m, TB, D) input block plus ~4 f32 (TB, D) pair temporaries must fit the
    per-generation budget, and the input block itself stays multi-MiB so DMAs
    are long and HBM utilization stays near roofline."""
    sub = max(8, 32 // max(itemsize, 1))          # 8 f32, 16 bf16, 32 int8/fp8
    total_budget = (40 << 20) if vmem_cap <= (64 << 20) else (64 << 20)
    input_block_budget = 8 << 20                  # per buffered input copy
    per_row_total = 2 * m * D * itemsize + 4 * D * 4
    per_row_input = m * D * itemsize
    tb = int(min(total_budget // per_row_total,
                 input_block_budget // max(per_row_input, 1)))
    if tb >= B:
        return B                                  # full-extent block: any B ok
    tb = (tb // sub) * sub
    return max(sub, tb)


def dist_loss(x_stack, *, tb=None):
    """x_stack: (m, B, D) array (f32 or bf16) -> scalar float32 loss."""
    m, B, D = x_stack.shape
    itemsize = x_stack.dtype.itemsize
    vmem_cap, num_tc = _tpu_params()

    sub = max(8, 32 // max(itemsize, 1))          # dtype sublane multiple
    if tb is None:
        tb = _choose_tb(m, B, D, itemsize, vmem_cap)
    tb = min(int(tb), B)
    if tb < B:                                    # (8,128) / packing rule
        tb = max(sub, (tb // sub) * sub)
    nb = pl.cdiv(B, tb)

    # Only split across TensorCores when the chip actually has more than one
    # (v7x); single-TC v5e/v6e keep a flat sequential grid (no wasted tile).
    nc = 2 if (num_tc >= 2 and nb > 1) else 1
    tiles_per_core = pl.cdiv(nb, nc)
    # TODO(synk): on v7x, verify "parallel" really megacore-shards this axis;
    # switch to pltpu.CORE_PARALLEL / pl.core_map(create_tensorcore_mesh) if not.

    if nc * tiles_per_core == nb:
        in_index = lambda c, b: (0, c * tiles_per_core + b, 0)
    else:  # odd split: clamp the duplicated tile; its rows are masked in-kernel
        in_index = lambda c, b: (0, jnp.minimum(c * tiles_per_core + b, nb - 1), 0)

    npairs = m * (m - 1) // 2
    cost = pl.CostEstimate(
        flops=int(npairs * B * (5 * D + 1)),
        transcendentals=int(npairs * B),
        bytes_accessed=int(x_stack.size * itemsize + nc * 4),
    )

    est_vmem = 2 * m * tb * D * itemsize + 4 * tb * D * 4 + (1 << 20)
    vmem_limit = int(min(vmem_cap * 3 // 4, max(32 << 20, est_vmem)))

    partials = pl.pallas_call(
        functools.partial(_dist_loss_kernel, total_rows=B),
        grid=(nc, tiles_per_core),
        in_specs=[pl.BlockSpec((m, tb, D), in_index)],
        out_specs=pl.BlockSpec((1, 1), lambda c, b: (c, 0),
                               memory_space=pltpu.SMEM),
        out_shape=jax.ShapeDtypeStruct((nc, 1), jnp.float32),
        compiler_params=pltpu.CompilerParams(
            dimension_semantics=("parallel", "arbitrary"),
            vmem_limit_bytes=vmem_limit),
        cost_estimate=cost,
    )(x_stack)

    # Finalize in the (tiny) wrapper: reduce per-core partials, scale, relu.
    dist = jnp.sum(partials) * (2.0 / (m * (m - 1))) / B
    return jnp.maximum(jnp.float32(2.0) - dist, jnp.float32(0.0))


def _dist_loss_ref(x_stack):
    # pure-JAX reference of the PyTorch forward (compute in f32, like the kernel)
    m = x_stack.shape[0]
    x = x_stack.astype(jnp.float32)
    dist = 0.0
    for i in range(m):
        for j in range(i + 1, m):
            diff = x[i] - x[j] + _EPS
            d = jnp.sqrt(jnp.sum(diff * diff, axis=-1))
            dist = dist + jnp.mean(d)
    dist = 2.0 / (m * (m - 1)) * dist
    return jnp.maximum(2.0 - dist, 0.0)


if __name__ == "__main__":
    key = jax.random.PRNGKey(0)

    # 4 branch embeddings, batch 8, feature dim 32 (single full-extent tile).
    m, B, D = 4, 8, 32
    xl = 0.05 * jax.random.normal(key, (m, B, D), dtype=jnp.float32)
    out = jax.block_until_ready(dist_loss(xl))
    ref = jax.block_until_ready(_dist_loss_ref(xl))
    assert jnp.allclose(out, ref, rtol=2e-3, atol=2e-3), (out, ref)

    # Tiled / boundary-masked path: B=20 with TB=8 -> 3 tiles, last partial.
    m2, B2, D2 = 3, 20, 128
    xl2 = 0.05 * jax.random.normal(jax.random.PRNGKey(0), (m2, B2, D2),
                                   dtype=jnp.float32)
    out2 = jax.block_until_ready(dist_loss(xl2, tb=8))
    ref2 = jax.block_until_ready(_dist_loss_ref(xl2))
    assert jnp.allclose(out2, ref2, rtol=2e-3, atol=2e-3), (out2, ref2)

    # bf16 input path: bf16 stays bf16 over the DMA, f32 compute in-kernel;
    # TB=16 exercises the bf16 sublane-multiple rounding + boundary mask.
    xl3 = xl2.astype(jnp.bfloat16)
    out3 = jax.block_until_ready(dist_loss(xl3, tb=16))
    ref3 = jax.block_until_ready(_dist_loss_ref(xl3))
    assert jnp.allclose(out3, ref3, rtol=5e-3, atol=5e-3), (out3, ref3)

    print("KERNEL_OK")
</pallas_src>

<mosaic_0001>
module attributes {stable_mosaic.version = 11 : i64} {
  func.func @_dist_loss_kernel(%arg0: i32, %arg1: i32, %arg2: memref<4x8x32xf32, #tpu.memory_space<vmem>>, %arg3: memref<1x1xf32, #tpu.memory_space<smem>>) attributes {dimension_semantics = [#tpu.dimension_semantics<parallel>, #tpu.dimension_semantics<arbitrary>], iteration_bounds = array<i64: 1, 1>, scalar_prefetch = 0 : i64, scratch_operands = 0 : i64, tpu.core_type = #tpu.core_type<tc>, window_params = [{transform_indices = @transform_0, window_bounds = array<i64: 4, 8, 32>}, {transform_indices = @transform_1, window_bounds = array<i64: 1, 1>}]} {
    %c0_i32 = arith.constant 0 : i32
    %0 = arith.cmpi eq, %arg1, %c0_i32 : i32
    %1 = arith.extui %0 : i1 to i32
    %c0_i32_0 = arith.constant 0 : i32
    %2 = arith.cmpi ne, %1, %c0_i32_0 : i32
    scf.if %2 {
      %cst_26 = arith.constant 0.000000e+00 : f32
      %c0_27 = arith.constant 0 : index
      %c0_28 = arith.constant 0 : index
      %65 = memref.load %arg3[%c0_27, %c0_28] : memref<1x1xf32, #tpu.memory_space<smem>>
      memref.store %cst_26, %arg3[%c0_27, %c0_28] : memref<1x1xf32, #tpu.memory_space<smem>>
    } else {
    }
    %cst = arith.constant 1.000000e+00 : f32
    %3 = vector.broadcast %cst : f32 to vector<32x1xf32>
    %c0 = arith.constant 0 : index
    %c0_1 = arith.constant 0 : index
    %c0_2 = arith.constant 0 : index
    %4 = vector.load %arg2[%c0, %c0_1, %c0_2] : memref<4x8x32xf32, #tpu.memory_space<vmem>>, vector<1x8x32xf32>
    %5 = vector.shape_cast %4 : vector<1x8x32xf32> to vector<8x32xf32>
    %c1 = arith.constant 1 : index
    %c0_3 = arith.constant 0 : index
    %c0_4 = arith.constant 0 : index
    %6 = vector.load %arg2[%c1, %c0_3, %c0_4] : memref<4x8x32xf32, #tpu.memory_space<vmem>>, vector<1x8x32xf32>
    %7 = vector.shape_cast %6 : vector<1x8x32xf32> to vector<8x32xf32>
    %c2 = arith.constant 2 : index
    %c0_5 = arith.constant 0 : index
    %c0_6 = arith.constant 0 : index
    %8 = vector.load %arg2[%c2, %c0_5, %c0_6] : memref<4x8x32xf32, #tpu.memory_space<vmem>>, vector<1x8x32xf32>
    %9 = vector.shape_cast %8 : vector<1x8x32xf32> to vector<8x32xf32>
    %c3 = arith.constant 3 : index
    %c0_7 = arith.constant 0 : index
    %c0_8 = arith.constant 0 : index
    %10 = vector.load %arg2[%c3, %c0_7, %c0_8] : memref<4x8x32xf32, #tpu.memory_space<vmem>>, vector<1x8x32xf32>
    %11 = vector.shape_cast %10 : vector<1x8x32xf32> to vector<8x32xf32>
    %cst_9 = arith.constant 0.000000e+00 : f32
    %12 = vector.broadcast %cst_9 : f32 to vector<8x1xf32>
    %13 = arith.subf %5, %7 : vector<8x32xf32>
    %cst_10 = arith.constant 9.99999997E-7 : f32
    %14 = vector.broadcast %cst_10 : f32 to vector<8x32xf32>
    %15 = arith.addf %13, %14 : vector<8x32xf32>
    %16 = arith.mulf %15, %15 : vector<8x32xf32>
    %cst_11 = arith.constant dense<0.000000e+00> : vector<8x1xf32>
    %17 = tpu.matmul %16, %3, %cst_11 {dimension_numbers = #tpu.dot_dimension_numbers<[1], [0], [0], [1], [0, 0, 1, 1], [], []>} : vector<8x32xf32>, vector<32x1xf32>, vector<8x1xf32> -> vector<8x1xf32>
    %18 = math.sqrt %17 : vector<8x1xf32>
    %19 = arith.addf %12, %18 : vector<8x1xf32>
    %20 = arith.subf %5, %9 : vector<8x32xf32>
    %cst_12 = arith.constant 9.99999997E-7 : f32
    %21 = vector.broadcast %cst_12 : f32 to vector<8x32xf32>
    %22 = arith.addf %20, %21 : vector<8x32xf32>
    %23 = arith.mulf %22, %22 : vector<8x32xf32>
    %cst_13 = arith.constant dense<0.000000e+00> : vector<8x1xf32>
    %24 = tpu.matmul %23, %3, %cst_13 {dimension_numbers = #tpu.dot_dimension_numbers<[1], [0], [0], [1], [0, 0, 1, 1], [], []>} : vector<8x32xf32>, vector<32x1xf32>, vector<8x1xf32> -> vector<8x1xf32>
    %25 = math.sqrt %24 : vector<8x1xf32>
    %26 = arith.addf %19, %25 : vector<8x1xf32>
    %27 = arith.subf %5, %11 : vector<8x32xf32>
    %cst_14 = arith.constant 9.99999997E-7 : f32
    %28 = vector.broadcast %cst_14 : f32 to vector<8x32xf32>
    %29 = arith.addf %27, %28 : vector<8x32xf32>
    %30 = arith.mulf %29, %29 : vector<8x32xf32>
    %cst_15 = arith.constant dense<0.000000e+00> : vector<8x1xf32>
    %31 = tpu.matmul %30, %3, %cst_15 {dimension_numbers = #tpu.dot_dimension_numbers<[1], [0], [0], [1], [0, 0, 1, 1], [], []>} : vector<8x32xf32>, vector<32x1xf32>, vector<8x1xf32> -> vector<8x1xf32>
    %32 = math.sqrt %31 : vector<8x1xf32>
    %33 = arith.addf %26, %32 : vector<8x1xf32>
    %34 = arith.subf %7, %9 : vector<8x32xf32>
    %cst_16 = arith.constant 9.99999997E-7 : f32
    %35 = vector.broadcast %cst_16 : f32 to vector<8x32xf32>
    %36 = arith.addf %34, %35 : vector<8x32xf32>
    %37 = arith.mulf %36, %36 : vector<8x32xf32>
    %cst_17 = arith.constant dense<0.000000e+00> : vector<8x1xf32>
    %38 = tpu.matmul %37, %3, %cst_17 {dimension_numbers = #tpu.dot_dimension_numbers<[1], [0], [0], [1], [0, 0, 1, 1], [], []>} : vector<8x32xf32>, vector<32x1xf32>, vector<8x1xf32> -> vector<8x1xf32>
    %39 = math.sqrt %38 : vector<8x1xf32>
    %40 = arith.addf %33, %39 : vector<8x1xf32>
    %41 = arith.subf %7, %11 : vector<8x32xf32>
    %cst_18 = arith.constant 9.99999997E-7 : f32
    %42 = vector.broadcast %cst_18 : f32 to vector<8x32xf32>
    %43 = arith.addf %41, %42 : vector<8x32xf32>
    %44 = arith.mulf %43, %43 : vector<8x32xf32>
    %cst_19 = arith.constant dense<0.000000e+00> : vector<8x1xf32>
    %45 = tpu.matmul %44, %3, %cst_19 {dimension_numbers = #tpu.dot_dimension_numbers<[1], [0], [0], [1], [0, 0, 1, 1], [], []>} : vector<8x32xf32>, vector<32x1xf32>, vector<8x1xf32> -> vector<8x1xf32>
    %46 = math.sqrt %45 : vector<8x1xf32>
    %47 = arith.addf %40, %46 : vector<8x1xf32>
    %48 = arith.subf %9, %11 : vector<8x32xf32>
    %cst_20 = arith.constant 9.99999997E-7 : f32
    %49 = vector.broadcast %cst_20 : f32 to vector<8x32xf32>
    %50 = arith.addf %48, %49 : vector<8x32xf32>
    %51 = arith.mulf %50, %50 : vector<8x32xf32>
    %cst_21 = arith.constant dense<0.000000e+00> : vector<8x1xf32>
    %52 = tpu.matmul %51, %3, %cst_21 {dimension_numbers = #tpu.dot_dimension_numbers<[1], [0], [0], [1], [0, 0, 1, 1], [], []>} : vector<8x32xf32>, vector<32x1xf32>, vector<8x1xf32> -> vector<8x1xf32>
    %53 = math.sqrt %52 : vector<8x1xf32>
    %54 = arith.addf %47, %53 : vector<8x1xf32>
    %c1_i32 = arith.constant 1 : i32
    %55 = arith.muli %arg0, %c1_i32 : i32
    %56 = arith.addi %55, %arg1 : i32
    %c8_i32 = arith.constant 8 : i32
    %57 = arith.muli %56, %c8_i32 : i32
    %c8_i32_22 = arith.constant 8 : i32
    %58 = arith.addi %57, %c8_i32_22 : i32
    %c8_i32_23 = arith.constant 8 : i32
    %59 = arith.cmpi sle, %58, %c8_i32_23 : i32
    %60 = arith.extui %59 : i1 to i32
    %c0_i32_24 = arith.constant 0 : i32
    %61 = arith.cmpi ne, %60, %c0_i32_24 : i32
    scf.if %61 {
      %c0_26 = arith.constant 0 : index
      %c0_27 = arith.constant 0 : index
      %65 = memref.load %arg3[%c0_26, %c0_27] : memref<1x1xf32, #tpu.memory_space<smem>>
      %66 = vector.shape_cast %54 : vector<8x1xf32> to vector<1x8x1xf32>
      %cst_28 = arith.constant dense<0.000000e+00> : vector<1xf32>
      %67 = vector.multi_reduction <add>, %66, %cst_28 [1, 2] : vector<1x8x1xf32> to vector<1xf32>
      %68 = vector.shape_cast %67 : vector<1xf32> to vector<1x1x1xf32>
      %69 = vector.extract %68[0, 0, 0] : f32 from vector<1x1x1xf32>
      %70 = arith.addf %65, %69 : f32
      %c0_29 = arith.constant 0 : index
      %c0_30 = arith.constant 0 : index
      %71 = memref.load %arg3[%c0_29, %c0_30] : memref<1x1xf32, #tpu.memory_space<smem>>
      memref.store %70, %arg3[%c0_29, %c0_30] : memref<1x1xf32, #tpu.memory_space<smem>>
    } else {
    }
    %true = arith.constant true
    %62 = arith.xori %59, %true : i1
    %63 = arith.extui %62 : i1 to i32
    %c0_i32_25 = arith.constant 0 : i32
    %64 = arith.cmpi ne, %63, %c0_i32_25 : i32
    scf.if %64 {
      %65 = tpu.iota {dimensions = array<i32: 0>} : vector<8x1xi32>
      %66 = vector.broadcast %57 : i32 to vector<8x1xi32>
      %67 = arith.addi %66, %65 : vector<8x1xi32>
      %c8_i32_26 = arith.constant 8 : i32
      %68 = vector.broadcast %c8_i32_26 : i32 to vector<8x1xi32>
      %69 = arith.cmpi slt, %67, %68 : vector<8x1xi32>
      %c0_27 = arith.constant 0 : index
      %c0_28 = arith.constant 0 : index
      %70 = memref.load %arg3[%c0_27, %c0_28] : memref<1x1xf32, #tpu.memory_space<smem>>
      %cst_29 = arith.constant 0.000000e+00 : f32
      %71 = vector.broadcast %cst_29 : f32 to vector<8x1xf32>
      %72 = arith.select %69, %54, %71 : vector<8x1xi1>, vector<8x1xf32>
      %73 = vector.shape_cast %72 : vector<8x1xf32> to vector<1x8x1xf32>
      %cst_30 = arith.constant dense<0.000000e+00> : vector<1xf32>
      %74 = vector.multi_reduction <add>, %73, %cst_30 [1, 2] : vector<1x8x1xf32> to vector<1xf32>
      %75 = vector.shape_cast %74 : vector<1xf32> to vector<1x1x1xf32>
      %76 = vector.extract %75[0, 0, 0] : f32 from vector<1x1x1xf32>
      %77 = arith.addf %70, %76 : f32
      %c0_31 = arith.constant 0 : index
      %c0_32 = arith.constant 0 : index
      %78 = memref.load %arg3[%c0_31, %c0_32] : memref<1x1xf32, #tpu.memory_space<smem>>
      memref.store %77, %arg3[%c0_31, %c0_32] : memref<1x1xf32, #tpu.memory_space<smem>>
    } else {
    }
    return
  }
  func.func @transform_0(%arg0: i32, %arg1: i32) -> (i32, i32, i32) {
    %c1_i32 = arith.constant 1 : i32
    %0 = arith.muli %arg0, %c1_i32 : i32
    %1 = arith.addi %0, %arg1 : i32
    %c0_i32 = arith.constant 0 : i32
    %c0_i32_0 = arith.constant 0 : i32
    %c0_i32_1 = arith.constant 0 : i32
    return %c0_i32, %1, %c0_i32_0 : i32, i32, i32
  }
  func.func @transform_1(%arg0: i32, %arg1: i32) -> (i32, i32) {
    %c0_i32 = arith.constant 0 : i32
    %c0_i32_0 = arith.constant 0 : i32
    return %arg0, %c0_i32 : i32, i32
  }
}

</mosaic_0001>

<llo_original>
// kernel: tpu_custom_call.1
$region0: #{tpu_custom_call.1}
  #allocation0 [shape = 'u32[]', space=smem, size = 0x4, offset = 0x4, fixed_abs, tag = 'smem constant byte address 0x4 - core index']
  #allocation1 [shape = 'u32[144,128]{1,0:T(1,128)}', space=vmem, size = 0x12000, scoped, tag = 'internal scratch']
  %s0 = inlined_call_operand.hbm [shape: f32[4,8,32], index: 0, kind: input, shape index: {}]
  %s1 = inlined_call_operand.hbm [shape: f32[1,1], index: 1, kind: output, shape index: {}]
  %s2 = sld [smem:[#allocation0]]
  $region30: #{tpu_custom_call.1} parent=0
    _
  %s4 = ssub.s32 1, %s2
  %s5 = scalar_select 0, %s4, %s2
  $region1: #{tpu_custom_call.1} parent=0
    #allocation2 [shape = 'u8[16384]{0}', space=vmem, size = 0x4000, scoped, tag = 'input window, operand 0, single buffered']
    #allocation3 [shape = 's32[1]{0}', space=sflag, size = 0x4, scoped, tag = 'scoped memory for tpu_custom_call.1']
    #allocation4 [shape = 's32[1]{0}', space=sflag, size = 0x4, scoped, tag = 'scoped memory for tpu_custom_call.1']
    #allocation5 [shape = 'u8[512]{0}', space=smem, size = 0x200, scoped, tag = 'output window, operand 0, single buffered']
    %6 = vsyncpa [#allocation3], 0
    %7 = vsyncpa [#allocation4], 0
    // Predicated region
    $region2: #{tpu_custom_call.1} parent=1 // pred_check
      _
    $region3: #{tpu_custom_call.1} parent=1 // pred_check_branch
      %9 = sbr.rel (0) target = $region5
    $region4: #{tpu_custom_call.1} parent=1 // pred_region
      %s10 = sadd.s32 0, 0
      %s12 = ssub.s32 512, 512
      %13 = vsyncadd [#allocation3], %s12
      %s14 = smul.addr %s10, 128
      %s15 = scalar_lea.hbm %s0, %s14
      %s16 = sshll.u32 [#allocation2], 4
      %s17 = int_to_ptr.vmem [resolvable:$true] %s16
      %22 = dma.hbm_to_vmem [thread:$0]  %s15, 512, %s17, [#allocation3], 128, 128, 8
    $region5: #{tpu_custom_call.1} parent=1 // pred_fallthru
      _
    // Predicated region
    $region6: #{tpu_custom_call.1} parent=1 // pred_check
      _
    $region7: #{tpu_custom_call.1} parent=1 // pred_check_branch
      %24 = sbr.rel (0) target = $region9
    $region8: #{tpu_custom_call.1} parent=1 // pred_region
      %25 = dma.done [#allocation3], 512
    $region9: #{tpu_custom_call.1} parent=1 // pred_fallthru
      _
    %s26 = sadd.s32 0, 0
    %p27 = scmp.eq.s32.totalorder 0, 0
    // Predicated region
    $region10: #{tpu_custom_call.1} parent=1 // pred_check
      %p28 = pneg %p27
    $region11: #{tpu_custom_call.1} parent=1 // pred_check_branch
      %30 = sbr.rel (%p28) target = $region13
    $region12: #{tpu_custom_call.1} parent=1 // pred_region
      %s31 = scalar_lea.smem [#allocation5], 0
      %32 = sst [smem:[%s31]] 0.0
    $region13: #{tpu_custom_call.1} parent=1 // pred_fallthru
      _
    %v33 = vld [vmem:[#allocation2] sm:$0xff]
    %s34 = scalar_lea.vmem [#allocation2], 8
    %v35 = vld [vmem:[%s34] sm:$0xff]
    %s36 = scalar_lea.vmem [#allocation2], 16
    %v37 = vld [vmem:[%s36] sm:$0xff]
    %s38 = scalar_lea.vmem [#allocation2], 24
    %v39 = vld [vmem:[%s38] sm:$0xff]
    %v40 = vsub.f32 %v33, %v35
    %v41 = vadd.f32 %v40, 1e-06
    %v42 = vmul.f32 %v41, %v41
    %vm43 = vcmask 261120
    %v45 = vsel %vm43, %v42, 0
    %47 = vmatprep.subr.mxu0 0.0
    %48 = vmatpush1.msra.mxu0 1.0
    %49 = vmatprep.subr.mxu0 0.0
    %50 = vmatpush1.msra.mxu0 1.0
    %51 = vmatprep.subr.mxu0 0.0
    %52 = vmatpush1.msra.mxu0 1.0
    %53 = vmatprep.subr.mxu0 0.0
    %54 = vmatpush1.msra.mxu0 1.0
    %55 = vmatprep.subr.mxu0 0.0
    %56 = vmatpush1.msra.mxu0 0.0
    %57 = vmatprep.subr.mxu0 0.0
    %58 = vmatpush1.msra.mxu0 0.0
    %59 = vmatprep.subr.mxu0 0.0
    %60 = vmatpush1.msra.mxu0 0.0
    %61 = vmatprep.subr.mxu0 0.0
    %62 = vmatpush1.msra.mxu0 0.0
    %63 = vmatprep.subr.mxu0 0.0
    %64 = vmatpush1.msra.mxu0 0.0
    %65 = vmatprep.subr.mxu0 0.0
    %66 = vmatpush1.msra.mxu0 0.0
    %67 = vmatprep.subr.mxu0 0.0
    %68 = vmatpush1.msra.mxu0 0.0
    %69 = vmatprep.subr.mxu0 0.0
    %70 = vmatpush1.msra.mxu0 0.0
    %71 = vmatprep.subr.mxu0 0.0
    %72 = vmatpush1.msra.mxu0 0.0
    %73 = vmatprep.subr.mxu0 0.0
    %74 = vmatpush1.msra.mxu0 0.0
    %75 = vmatprep.subr.mxu0 0.0
    %76 = vmatpush1.msra.mxu0 0.0
    %77 = vmatprep.subr.mxu0 0.0
    %78 = vmatpush1.msra.mxu0 0.0
    %79 = vmatprep.subr.mxu0 0.0
    %80 = vmatpush1.msra.mxu0 0.0
    %81 = vmatprep.subr.mxu0 0.0
    %82 = vmatpush1.msra.mxu0 0.0
    %83 = vmatprep.subr.mxu0 0.0
    %84 = vmatpush1.msra.mxu0 0.0
    %85 = vmatprep.subr.mxu0 0.0
    %86 = vmatpush1.msra.mxu0 0.0
    %87 = vmatprep.subr.mxu0 0.0
    %88 = vmatpush1.msra.mxu0 0.0
    %89 = vmatprep.subr.mxu0 0.0
    %90 = vmatpush1.msra.mxu0 0.0
    %91 = vmatprep.subr.mxu0 0.0
    %92 = vmatpush1.msra.mxu0 0.0
    %93 = vmatprep.subr.mxu0 0.0
    %94 = vmatpush1.msra.mxu0 0.0
    %95 = vmatprep.subr.mxu0 0.0
    %96 = vmatpush1.msra.mxu0 0.0
    %97 = vmatprep.subr.mxu0 0.0
    %98 = vmatpush1.msra.mxu0 0.0
    %99 = vmatprep.subr.mxu0 0.0
    %100 = vmatpush1.msra.mxu0 0.0
    %101 = vmatprep.subr.mxu0 0.0
    %102 = vmatpush1.msra.mxu0 0.0
    %103 = vmatprep.subr.mxu0 0.0
    %104 = vmatpush1.msra.mxu0 0.0
    %105 = vmatprep.subr.mxu0 0.0
    %106 = vmatpush1.msra.mxu0 0.0
    %107 = vmatprep.subr.mxu0 0.0
    %108 = vmatpush1.msra.mxu0 0.0
    %109 = vmatprep.subr.mxu0 0.0
    %110 = vmatpush1.msra.mxu0 0.0
    %111 = vmatprep.mubr.f32.mxu0 0.0
    %112 = vmatmul.mubr.f32.gmra.mrb[0].mxu0 %v45
    %v113 = vpop.f32.mrb[0].mxu0
    %v114 = vadd.f32 0.0, %v113
    %v115 = vpop.f32.mrb[0].mxu0
    %116 = vdwg.mxu0
    %v117 = vrsqrt.pop %v114
    %v118 = vmul.f32 %v114, %v117
    %vm119 = vcmp.eq.f32.partialorder %v114, inf
    %v120 = vsel %vm119, %v114, %v118
    %vm121 = vcmp.eq.f32.partialorder %v114, 0.0
    %v122 = vand.u32 %v114, 2147483648
    %v123 = vsel %vm121, %v122, %v120
    %v124 = vadd.f32 %v123, 0.0
    %v125 = vsub.f32 %v33, %v37
    %v126 = vadd.f32 %v125, 1e-06
    %v127 = vmul.f32 %v126, %v126
    %v129 = vsel %vm43, %v127, 0
    %131 = vmatprep.subr.mxu0 0.0
    %132 = vmatpush1.msra.mxu0 1.0
    %133 = vmatprep.subr.mxu0 0.0
    %134 = vmatpush1.msra.mxu0 1.0
    %135 = vmatprep.subr.mxu0 0.0
    %136 = vmatpush1.msra.mxu0 1.0
    %137 = vmatprep.subr.mxu0 0.0
    %138 = vmatpush1.msra.mxu0 1.0
    %139 = vmatprep.subr.mxu0 0.0
    %140 = vmatpush1.msra.mxu0 0.0
    %141 = vmatprep.subr.mxu0 0.0
    %142 = vmatpush1.msra.mxu0 0.0
    %143 = vmatprep.subr.mxu0 0.0
    %144 = vmatpush1.msra.mxu0 0.0
    %145 = vmatprep.subr.mxu0 0.0
    %146 = vmatpush1.msra.mxu0 0.0
    %147 = vmatprep.subr.mxu0 0.0
    %148 = vmatpush1.msra.mxu0 0.0
    %149 = vmatprep.subr.mxu0 0.0
    %150 = vmatpush1.msra.mxu0 0.0
    %151 = vmatprep.subr.mxu0 0.0
    %152 = vmatpush1.msra.mxu0 0.0
    %153 = vmatprep.subr.mxu0 0.0
    %154 = vmatpush1.msra.mxu0 0.0
    %155 = vmatprep.subr.mxu0 0.0
    %156 = vmatpush1.msra.mxu0 0.0
    %157 = vmatprep.subr.mxu0 0.0
    %158 = vmatpush1.msra.mxu0 0.0
    %159 = vmatprep.subr.mxu0 0.0
    %160 = vmatpush1.msra.mxu0 0.0
    %161 = vmatprep.subr.mxu0 0.0
    %162 = vmatpush1.msra.mxu0 0.0
    %163 = vmatprep.subr.mxu0 0.0
    %164 = vmatpush1.msra.mxu0 0.0
    %165 = vmatprep.subr.mxu0 0.0
    %166 = vmatpush1.msra.mxu0 0.0
    %167 = vmatprep.subr.mxu0 0.0
    %168 = vmatpush1.msra.mxu0 0.0
    %169 = vmatprep.subr.mxu0 0.0
    %170 = vmatpush1.msra.mxu0 0.0
    %171 = vmatprep.subr.mxu0 0.0
    %172 = vmatpush1.msra.mxu0 0.0
    %173 = vmatprep.subr.mxu0 0.0
    %174 = vmatpush1.msra.mxu0 0.0
    %175 = vmatprep.subr.mxu0 0.0
    %176 = vmatpush1.msra.mxu0 0.0
    %177 = vmatprep.subr.mxu0 0.0
    %178 = vmatpush1.msra.mxu0 0.0
    %179 = vmatprep.subr.mxu0 0.0
    %180 = vmatpush1.msra.mxu0 0.0
    %181 = vmatprep.subr.mxu0 0.0
    %182 = vmatpush1.msra.mxu0 0.0
    %183 = vmatprep.subr.mxu0 0.0
    %184 = vmatpush1.msra.mxu0 0.0
    %185 = vmatprep.subr.mxu0 0.0
    %186 = vmatpush1.msra.mxu0 0.0
    %187 = vmatprep.subr.mxu0 0.0
    %188 = vmatpush1.msra.mxu0 0.0
    %189 = vmatprep.subr.mxu0 0.0
    %190 = vmatpush1.msra.mxu0 0.0
    %191 = vmatprep.subr.mxu0 0.0
    %192 = vmatpush1.msra.mxu0 0.0
    %193 = vmatprep.subr.mxu0 0.0
    %194 = vmatpush1.msra.mxu0 0.0
    %195 = vmatprep.mubr.f32.mxu0 0.0
    %196 = vmatmul.mubr.f32.gmra.mrb[0].mxu0 %v129
    %v197 = vpop.f32.mrb[0].mxu0
    %v198 = vadd.f32 0.0, %v197
    %v199 = vpop.f32.mrb[0].mxu0
    %200 = vdwg.mxu0
    %v201 = vrsqrt.pop %v198
    %v202 = vmul.f32 %v198, %v201
    %vm203 = vcmp.eq.f32.partialorder %v198, inf
    %v204 = vsel %vm203, %v198, %v202
    %vm205 = vcmp.eq.f32.partialorder %v198, 0.0
    %v206 = vand.u32 %v198, 2147483648
    %v207 = vsel %vm205, %v206, %v204
    %v208 = vadd.f32 %v124, %v207
    %v209 = vsub.f32 %v33, %v39
    %v210 = vadd.f32 %v209, 1e-06
    %v211 = vmul.f32 %v210, %v210
    %v213 = vsel %vm43, %v211, 0
    %215 = vmatprep.subr.mxu0 0.0
    %216 = vmatpush1.msra.mxu0 1.0
    %217 = vmatprep.subr.mxu0 0.0
    %218 = vmatpush1.msra.mxu0 1.0
    %219 = vmatprep.subr.mxu0 0.0
    %220 = vmatpush1.msra.mxu0 1.0
    %221 = vmatprep.subr.mxu0 0.0
    %222 = vmatpush1.msra.mxu0 1.0
    %223 = vmatprep.subr.mxu0 0.0
    %224 = vmatpush1.msra.mxu0 0.0
    %225 = vmatprep.subr.mxu0 0.0
    %226 = vmatpush1.msra.mxu0 0.0
    %227 = vmatprep.subr.mxu0 0.0
    %228 = vmatpush1.msra.mxu0 0.0
    %229 = vmatprep.subr.mxu0 0.0
    %230 = vmatpush1.msra.mxu0 0.0
    %231 = vmatprep.subr.mxu0 0.0
    %232 = vmatpush1.msra.mxu0 0.0
    %233 = vmatprep.subr.mxu0 0.0
    %234 = vmatpush1.msra.mxu0 0.0
    %235 = vmatprep.subr.mxu0 0.0
    %236 = vmatpush1.msra.mxu0 0.0
    %237 = vmatprep.subr.mxu0 0.0
    %238 = vmatpush1.msra.mxu0 0.0
    %239 = vmatprep.subr.mxu0 0.0
    %240 = vmatpush1.msra.mxu0 0.0
    %241 = vmatprep.subr.mxu0 0.0
    %242 = vmatpush1.msra.mxu0 0.0
    %243 = vmatprep.subr.mxu0 0.0
    %244 = vmatpush1.msra.mxu0 0.0
    %245 = vmatprep.subr.mxu0 0.0
    %246 = vmatpush1.msra.mxu0 0.0
    %247 = vmatprep.subr.mxu0 0.0
    %248 = vmatpush1.msra.mxu0 0.0
    %249 = vmatprep.subr.mxu0 0.0
    %250 = vmatpush1.msra.mxu0 0.0
    %251 = vmatprep.subr.mxu0 0.0
    %252 = vmatpush1.msra.mxu0 0.0
    %253 = vmatprep.subr.mxu0 0.0
    %254 = vmatpush1.msra.mxu0 0.0
    %255 = vmatprep.subr.mxu0 0.0
    %256 = vmatpush1.msra.mxu0 0.0
    %257 = vmatprep.subr.mxu0 0.0
    %258 = vmatpush1.msra.mxu0 0.0
    %259 = vmatprep.subr.mxu0 0.0
    %260 = vmatpush1.msra.mxu0 0.0
    %261 = vmatprep.subr.mxu0 0.0
    %262 = vmatpush1.msra.mxu0 0.0
    %263 = vmatprep.subr.mxu0 0.0
    %264 = vmatpush1.msra.mxu0 0.0
    %265 = vmatprep.subr.mxu0 0.0
    %266 = vmatpush1.msra.mxu0 0.0
    %267 = vmatprep.subr.mxu0 0.0
    %268 = vmatpush1.msra.mxu0 0.0
    %269 = vmatprep.subr.mxu0 0.0
    %270 = vmatpush1.msra.mxu0 0.0
    %271 = vmatprep.subr.mxu0 0.0
    %272 = vmatpush1.msra.mxu0 0.0
    %273 = vmatprep.subr.mxu0 0.0
    %274 = vmatpush1.msra.mxu0 0.0
    %275 = vmatprep.subr.mxu0 0.0
    %276 = vmatpush1.msra.mxu0 0.0
    %277 = vmatprep.subr.mxu0 0.0
    %278 = vmatpush1.msra.mxu0 0.0
    %279 = vmatprep.mubr.f32.mxu0 0.0
    %280 = vmatmul.mubr.f32.gmra.mrb[0].mxu0 %v213
    %v281 = vpop.f32.mrb[0].mxu0
    %v282 = vadd.f32 0.0, %v281
    %v283 = vpop.f32.mrb[0].mxu0
    %284 = vdwg.mxu0
    %v285 = vrsqrt.pop %v282
    %v286 = vmul.f32 %v282, %v285
    %vm287 = vcmp.eq.f32.partialorder %v282, inf
    %v288 = vsel %vm287, %v282, %v286
    %vm289 = vcmp.eq.f32.partialorder %v282, 0.0
    %v290 = vand.u32 %v282, 2147483648
    %v291 = vsel %vm289, %v290, %v288
    %v292 = vadd.f32 %v208, %v291
    %v293 = vsub.f32 %v35, %v37
    %v294 = vadd.f32 %v293, 1e-06
    %v295 = vmul.f32 %v294, %v294
    %v297 = vsel %vm43, %v295, 0
    %299 = vmatprep.subr.mxu0 0.0
    %300 = vmatpush1.msra.mxu0 1.0
    %301 = vmatprep.subr.mxu0 0.0
    %302 = vmatpush1.msra.mxu0 1.0
    %303 = vmatprep.subr.mxu0 0.0
    %304 = vmatpush1.msra.mxu0 1.0
    %305 = vmatprep.subr.mxu0 0.0
    %306 = vmatpush1.msra.mxu0 1.0
    %307 = vmatprep.subr.mxu0 0.0
    %308 = vmatpush1.msra.mxu0 0.0
    %309 = vmatprep.subr.mxu0 0.0
    %310 = vmatpush1.msra.mxu0 0.0
    %311 = vmatprep.subr.mxu0 0.0
    %312 = vmatpush1.msra.mxu0 0.0
    %313 = vmatprep.subr.mxu0 0.0
    %314 = vmatpush1.msra.mxu0 0.0
    %315 = vmatprep.subr.mxu0 0.0
    %316 = vmatpush1.msra.mxu0 0.0
    %317 = vmatprep.subr.mxu0 0.0
    %318 = vmatpush1.msra.mxu0 0.0
    %319 = vmatprep.subr.mxu0 0.0
    %320 = vmatpush1.msra.mxu0 0.0
    %321 = vmatprep.subr.mxu0 0.0
    %322 = vmatpush1.msra.mxu0 0.0
    %323 = vmatprep.subr.mxu0 0.0
    %324 = vmatpush1.msra.mxu0 0.0
    %325 = vmatprep.subr.mxu0 0.0
    %326 = vmatpush1.msra.mxu0 0.0
    %327 = vmatprep.subr.mxu0 0.0
    %328 = vmatpush1.msra.mxu0 0.0
    %329 = vmatprep.subr.mxu0 0.0
    %330 = vmatpush1.msra.mxu0 0.0
    %331 = vmatprep.subr.mxu0 0.0
    %332 = vmatpush1.msra.mxu0 0.0
    %333 = vmatprep.subr.mxu0 0.0
    %334 = vmatpush1.msra.mxu0 0.0
    %335 = vmatprep.subr.mxu0 0.0
    %336 = vmatpush1.msra.mxu0 0.0
    %337 = vmatprep.subr.mxu0 0.0
    %338 = vmatpush1.msra.mxu0 0.0
    %339 = vmatprep.subr.mxu0 0.0
    %340 = vmatpush1.msra.mxu0 0.0
    %341 = vmatprep.subr.mxu0 0.0
    %342 = vmatpush1.msra.mxu0 0.0
    %343 = vmatprep.subr.mxu0 0.0
    %344 = vmatpush1.msra.mxu0 0.0
    %345 = vmatprep.subr.mxu0 0.0
    %346 = vmatpush1.msra.mxu0 0.0
    %347 = vmatprep.subr.mxu0 0.0
    %348 = vmatpush1.msra.mxu0 0.0
    %349 = vmatprep.subr.mxu0 0.0
    %350 = vmatpush1.msra.mxu0 0.0
    %351 = vmatprep.subr.mxu0 0.0
    %352 = vmatpush1.msra.mxu0 0.0
    %353 = vmatprep.subr.mxu0 0.0
    %354 = vmatpush1.msra.mxu0 0.0
    %355 = vmatprep.subr.mxu0 0.0
    %356 = vmatpush1.msra.mxu0 0.0
    %357 = vmatprep.subr.mxu0 0.0
    %358 = vmatpush1.msra.mxu0 0.0
    %359 = vmatprep.subr.mxu0 0.0
    %360 = vmatpush1.msra.mxu0 0.0
    %361 = vmatprep.subr.mxu0 0.0
    %362 = vmatpush1.msra.mxu0 0.0
    %363 = vmatprep.mubr.f32.mxu0 0.0
    %364 = vmatmul.mubr.f32.gmra.mrb[0].mxu0 %v297
    %v365 = vpop.f32.mrb[0].mxu0
    %v366 = vadd.f32 0.0, %v365
    %v367 = vpop.f32.mrb[0].mxu0
    %368 = vdwg.mxu0
    %v369 = vrsqrt.pop %v366
    %v370 = vmul.f32 %v366, %v369
    %vm371 = vcmp.eq.f32.partialorder %v366, inf
    %v372 = vsel %vm371, %v366, %v370
    %vm373 = vcmp.eq.f32.partialorder %v366, 0.0
    %v374 = vand.u32 %v366, 2147483648
    %v375 = vsel %vm373, %v374, %v372
    %v376 = vadd.f32 %v292, %v375
    %v377 = vsub.f32 %v35, %v39
    %v378 = vadd.f32 %v377, 1e-06
    %v379 = vmul.f32 %v378, %v378
    %v381 = vsel %vm43, %v379, 0
    %383 = vmatprep.subr.mxu0 0.0
    %384 = vmatpush1.msra.mxu0 1.0
    %385 = vmatprep.subr.mxu0 0.0
    %386 = vmatpush1.msra.mxu0 1.0
    %387 = vmatprep.subr.mxu0 0.0
    %388 = vmatpush1.msra.mxu0 1.0
    %389 = vmatprep.subr.mxu0 0.0
    %390 = vmatpush1.msra.mxu0 1.0
    %391 = vmatprep.subr.mxu0 0.0
    %392 = vmatpush1.msra.mxu0 0.0
    %393 = vmatprep.subr.mxu0 0.0
    %394 = vmatpush1.msra.mxu0 0.0
    %395 = vmatprep.subr.mxu0 0.0
    %396 = vmatpush1.msra.mxu0 0.0
    %397 = vmatprep.subr.mxu0 0.0
    %398 = vmatpush1.msra.mxu0 0.0
    %399 = vmatprep.subr.mxu0 0.0
    %400 = vmatpush1.msra.mxu0 0.0
    %401 = vmatprep.subr.mxu0 0.0
    %402 = vmatpush1.msra.mxu0 0.0
    %403 = vmatprep.subr.mxu0 0.0
    %404 = vmatpush1.msra.mxu0 0.0
    %405 = vmatprep.subr.mxu0 0.0
    %406 = vmatpush1.msra.mxu0 0.0
    %407 = vmatprep.subr.mxu0 0.0
    %408 = vmatpush1.msra.mxu0 0.0
    %409 = vmatprep.subr.mxu0 0.0
    %410 = vmatpush1.msra.mxu0 0.0
    %411 = vmatprep.subr.mxu0 0.0
    %412 = vmatpush1.msra.mxu0 0.0
    %413 = vmatprep.subr.mxu0 0.0
    %414 = vmatpush1.msra.mxu0 0.0
    %415 = vmatprep.subr.mxu0 0.0
    %416 = vmatpush1.msra.mxu0 0.0
    %417 = vmatprep.subr.mxu0 0.0
    %418 = vmatpush1.msra.mxu0 0.0
    %419 = vmatprep.subr.mxu0 0.0
    %420 = vmatpush1.msra.mxu0 0.0
    %421 = vmatprep.subr.mxu0 0.0
    %422 = vmatpush1.msra.mxu0 0.0
    %423 = vmatprep.subr.mxu0 0.0
    %424 = vmatpush1.msra.mxu0 0.0
    %425 = vmatprep.subr.mxu0 0.0
    %426 = vmatpush1.msra.mxu0 0.0
    %427 = vmatprep.subr.mxu0 0.0
    %428 = vmatpush1.msra.mxu0 0.0
    %429 = vmatprep.subr.mxu0 0.0
    %430 = vmatpush1.msra.mxu0 0.0
    %431 = vmatprep.subr.mxu0 0.0
    %432 = vmatpush1.msra.mxu0 0.0
    %433 = vmatprep.subr.mxu0 0.0
    %434 = vmatpush1.msra.mxu0 0.0
    %435 = vmatprep.subr.mxu0 0.0
    %436 = vmatpush1.msra.mxu0 0.0
    %437 = vmatprep.subr.mxu0 0.0
    %438 = vmatpush1.msra.mxu0 0.0
    %439 = vmatprep.subr.mxu0 0.0
    %440 = vmatpush1.msra.mxu0 0.0
    %441 = vmatprep.subr.mxu0 0.0
    %442 = vmatpush1.msra.mxu0 0.0
    %443 = vmatprep.subr.mxu0 0.0
    %444 = vmatpush1.msra.mxu0 0.0
    %445 = vmatprep.subr.mxu0 0.0
    %446 = vmatpush1.msra.mxu0 0.0
    %447 = vmatprep.mubr.f32.mxu0 0.0
    %448 = vmatmul.mubr.f32.gmra.mrb[0].mxu0 %v381
    %v449 = vpop.f32.mrb[0].mxu0
    %v450 = vadd.f32 0.0, %v449
    %v451 = vpop.f32.mrb[0].mxu0
    %452 = vdwg.mxu0
    %v453 = vrsqrt.pop %v450
    %v454 = vmul.f32 %v450, %v453
    %vm455 = vcmp.eq.f32.partialorder %v450, inf
    %v456 = vsel %vm455, %v450, %v454
    %vm457 = vcmp.eq.f32.partialorder %v450, 0.0
    %v458 = vand.u32 %v450, 2147483648
    %v459 = vsel %vm457, %v458, %v456
    %v460 = vadd.f32 %v376, %v459
    %v461 = vsub.f32 %v37, %v39
    %v462 = vadd.f32 %v461, 1e-06
    %v463 = vmul.f32 %v462, %v462
    %v465 = vsel %vm43, %v463, 0
    %467 = vmatprep.subr.mxu0 0.0
    %468 = vmatpush1.msra.mxu0 1.0
    %469 = vmatprep.subr.mxu0 0.0
    %470 = vmatpush1.msra.mxu0 1.0
    %471 = vmatprep.subr.mxu0 0.0
    %472 = vmatpush1.msra.mxu0 1.0
    %473 = vmatprep.subr.mxu0 0.0
    %474 = vmatpush1.msra.mxu0 1.0
    %475 = vmatprep.subr.mxu0 0.0
    %476 = vmatpush1.msra.mxu0 0.0
    %477 = vmatprep.subr.mxu0 0.0
    %478 = vmatpush1.msra.mxu0 0.0
    %479 = vmatprep.subr.mxu0 0.0
    %480 = vmatpush1.msra.mxu0 0.0
    %481 = vmatprep.subr.mxu0 0.0
    %482 = vmatpush1.msra.mxu0 0.0
    %483 = vmatprep.subr.mxu0 0.0
    %484 = vmatpush1.msra.mxu0 0.0
    %485 = vmatprep.subr.mxu0 0.0
    %486 = vmatpush1.msra.mxu0 0.0
    %487 = vmatprep.subr.mxu0 0.0
    %488 = vmatpush1.msra.mxu0 0.0
    %489 = vmatprep.subr.mxu0 0.0
    %490 = vmatpush1.msra.mxu0 0.0
    %491 = vmatprep.subr.mxu0 0.0
    %492 = vmatpush1.msra.mxu0 0.0
    %493 = vmatprep.subr.mxu0 0.0
    %494 = vmatpush1.msra.mxu0 0.0
    %495 = vmatprep.subr.mxu0 0.0
    %496 = vmatpush1.msra.mxu0 0.0
    %497 = vmatprep.subr.mxu0 0.0
    %498 = vmatpush1.msra.mxu0 0.0
    %499 = vmatprep.subr.mxu0 0.0
    %500 = vmatpush1.msra.mxu0 0.0
    %501 = vmatprep.subr.mxu0 0.0
    %502 = vmatpush1.msra.mxu0 0.0
    %503 = vmatprep.subr.mxu0 0.0
    %504 = vmatpush1.msra.mxu0 0.0
    %505 = vmatprep.subr.mxu0 0.0
    %506 = vmatpush1.msra.mxu0 0.0
    %507 = vmatprep.subr.mxu0 0.0
    %508 = vmatpush1.msra.mxu0 0.0
    %509 = vmatprep.subr.mxu0 0.0
    %510 = vmatpush1.msra.mxu0 0.0
    %511 = vmatprep.subr.mxu0 0.0
    %512 = vmatpush1.msra.mxu0 0.0
    %513 = vmatprep.subr.mxu0 0.0
    %514 = vmatpush1.msra.mxu0 0.0
    %515 = vmatprep.subr.mxu0 0.0
    %516 = vmatpush1.msra.mxu0 0.0
    %517 = vmatprep.subr.mxu0 0.0
    %518 = vmatpush1.msra.mxu0 0.0
    %519 = vmatprep.subr.mxu0 0.0
    %520 = vmatpush1.msra.mxu0 0.0
    %521 = vmatprep.subr.mxu0 0.0
    %522 = vmatpush1.msra.mxu0 0.0
    %523 = vmatprep.subr.mxu0 0.0
    %524 = vmatpush1.msra.mxu0 0.0
    %525 = vmatprep.subr.mxu0 0.0
    %526 = vmatpush1.msra.mxu0 0.0
    %527 = vmatprep.subr.mxu0 0.0
    %528 = vmatpush1.msra.mxu0 0.0
    %529 = vmatprep.subr.mxu0 0.0
    %530 = vmatpush1.msra.mxu0 0.0
    %531 = vmatprep.mubr.f32.mxu0 0.0
    %532 = vmatmul.mubr.f32.gmra.mrb[0].mxu0 %v465
    %v533 = vpop.f32.mrb[0].mxu0
    %v534 = vadd.f32 0.0, %v533
    %v535 = vpop.f32.mrb[0].mxu0
    %536 = vdwg.mxu0
    %v537 = vrsqrt.pop %v534
    %v538 = vmul.f32 %v534, %v537
    %vm539 = vcmp.eq.f32.partialorder %v534, inf
    %v540 = vsel %vm539, %v534, %v538
    %vm541 = vcmp.eq.f32.partialorder %v534, 0.0
    %v542 = vand.u32 %v534, 2147483648
    %v543 = vsel %vm541, %v542, %v540
    %v544 = vadd.f32 %v460, %v543
    %s545 = sadd.s32 0, 0
    %s546 = smul.u32 %s545, 8
    %s547 = sadd.s32 %s546, 8
    %p548 = scmp.le.s32.totalorder %s547, 8
    // Predicated region
    $region14: #{tpu_custom_call.1} parent=1 // pred_check
      %p549 = pneg %p548
    $region15: #{tpu_custom_call.1} parent=1 // pred_check_branch
      %551 = sbr.rel (%p549) target = $region17
    $region16: #{tpu_custom_call.1} parent=1 // pred_region
      %s552 = sld [smem:[#allocation5]]
      %vm553 = vcmask 7168
      %v554 = vsel %vm553, %v544, 0.0
      %555 = vadd.xlane.f32.xlu0 %v554
      %v556 = vpop.xlane.xlu0 %555
      %v557 = vrot.slane %v556, 4
      %v558 = vadd.f32 %v556, %v557
      %v559 = vrot.slane %v558, 2
      %v560 = vadd.f32 %v558, %v559
      %v561 = vrot.slane %v560, 1
      %v562 = vadd.f32 %v560, %v561
      %s563 = vtos %v562
      %s564 = sadd.f32 %s552, %s563
      %s565 = scalar_lea.smem [#allocation5], 0
      %566 = sst [smem:[%s565]] %s564
    $region17: #{tpu_custom_call.1} parent=1 // pred_fallthru
      _
    %p567 = scmp.gt.s32.totalorder %s547, 8
    // Predicated region
    $region18: #{tpu_custom_call.1} parent=1 // pred_check
      %p568 = pneg %p567
    $region19: #{tpu_custom_call.1} parent=1 // pred_check_branch
      %570 = sbr.rel (%p568) target = $region21
    $region20: #{tpu_custom_call.1} parent=1 // pred_region
      %v571 = vlaneseq
      %v572 = vshrl.u32 %v571, 7
      %v573 = vstv %s546
      %v574 = vadd.s32 %v573, %v572
      %vm575 = vcmp.lt.s32.totalorder %v574, 8
      %s576 = sld [smem:[#allocation5]]
      %v577 = vsel %vm575, %v544, 0.0
      %vm578 = vcmask 7168
      %v579 = vsel %vm578, %v577, 0.0
      %580 = vadd.xlane.f32.xlu0 %v579
      %v581 = vpop.xlane.xlu0 %580
      %v582 = vrot.slane %v581, 4
      %v583 = vadd.f32 %v581, %v582
      %v584 = vrot.slane %v583, 2
      %v585 = vadd.f32 %v583, %v584
      %v586 = vrot.slane %v585, 1
      %v587 = vadd.f32 %v585, %v586
      %s588 = vtos %v587
      %s589 = sadd.f32 %s576, %s588
      %s590 = scalar_lea.smem [#allocation5], 0
      %591 = sst [smem:[%s590]] %s589
    $region21: #{tpu_custom_call.1} parent=1 // pred_fallthru
      _
    // Predicated region
    $region22: #{tpu_custom_call.1} parent=1 // pred_check
      _
    $region23: #{tpu_custom_call.1} parent=1 // pred_check_branch
      %593 = sbr.rel (0) target = $region25
    $region24: #{tpu_custom_call.1} parent=1 // pred_region
      %s595 = ssub.s32 16, 16
      %596 = vsyncadd [#allocation4], %s595
      %599 = dma.smem_to_hbm [#allocation5], 16, %s1, [#allocation4]
    $region25: #{tpu_custom_call.1} parent=1 // pred_fallthru
      _
    // Predicated region
    $region26: #{tpu_custom_call.1} parent=1 // pred_check
      _
    $region27: #{tpu_custom_call.1} parent=1 // pred_check_branch
      %601 = sbr.rel (0) target = $region29
    $region28: #{tpu_custom_call.1} parent=1 // pred_region
      %602 = dma.done [#allocation4], 16
    $region29: #{tpu_custom_call.1} parent=1 // pred_fallthru
      _
    %603 = sfence
    %604 = vsyncpa [#allocation3], 1
    %605 = vsyncpa [#allocation4], 1

</llo_original>
